<compile_context>
chip_gen: v6e
topology: v6e:2x2x1
jax: 0.10.0
libtpu: 0.0.40
codegen_flags: <defaults>
</compile_context>

<pallas_src>
import numpy as np
import jax
import jax.numpy as jnp
from jax.experimental import pallas as pl
from jax.experimental.pallas import tpu as pltpu


# ----------------------------- parameter setup ------------------------------

def dct_mat(size):
    m = [[(np.sqrt(1.0 / size) if i == 0 else np.sqrt(2.0 / size))
          * np.cos((j + 0.5) * np.pi * i / size)
          for j in range(size)] for i in range(size)]
    return np.array(m, dtype=np.float32)


def generate_filter(start, end, size):
    # NB: keeps the original PyTorch boundary condition "i + j <= start".
    return np.array(
        [[0.0 if (i + j > end or i + j <= start) else 1.0 for j in range(size)]
         for i in range(size)],
        dtype=np.float32,
    )


def make_fad_params(size, key):
    """Deterministic parameter construction mirroring FAD_Head.__init__.

    Returns (D, base_filters, learnable).  The module's _DCT_all_T is exactly
    D.T, so it is not materialized separately (avoids silent divergence).
    """
    D = dct_mat(size)                      # (S, S)
    bands = [
        (0.0, size // 2.82),               # low
        (size // 2.82, size // 2),         # middle
        (size // 2, size * 2),             # high
        (0.0, size * 2),                   # all
    ]
    base = np.stack([generate_filter(s, e, size) for (s, e) in bands])  # (4, S, S)
    # learnable ~ N(0, 0.1) as in Filter.__init__ (deterministic via PRNGKey)
    learnable = 0.1 * jax.random.normal(key, (4, size, size), dtype=jnp.float32)
    return jnp.asarray(D), jnp.asarray(base), jnp.asarray(learnable, jnp.float32)


# --------------------------- fused operator build ----------------------------

def make_fad_operator(D, base, learnable, *, compute_dtype=jnp.bfloat16):
    """Stacked fused DCT -> filter -> IDCT operator W of shape (S^2, 4*S^2).

    Grid-invariant w.r.t. the input; if `learnable` is frozen (inference) the
    caller can compute this once and pass it to fad_head(W=...).
    """
    S = D.shape[0]
    S2 = S * S
    filt = base + 2.0 * jax.nn.sigmoid(learnable) - 1.0   # (4, S, S)
    v = filt.reshape(4, S2)                                # row-major vec(filt)
    Q = jnp.kron(D, D)                                     # vec(D X Dt) = Q vec(X)
    # M_f = Q^T diag(v_f) Q  (symmetric), so y_planes = x_planes @ M_f
    M = jnp.einsum("qp,fq,qr->fpr", Q, v, Q)               # (4, S2, S2)
    W = jnp.transpose(M, (1, 0, 2)).reshape(S2, 4 * S2)    # (S2, 4*S2)
    return W.astype(compute_dtype)


# --------------------------------- kernel -----------------------------------

def fad_kernel(x_ref, w_ref, o_ref):
    # x_ref: (TB, TC, S2)   bf16 flattened spatial planes
    # w_ref: (S2, 4*S2)     bf16 stacked fused operators (DMA'd once)
    # o_ref: (TB, 4, TC, S2) f32
    tb, tc, s2 = x_ref.shape
    # Fold batch tile into the matmul M dimension (free leading-dim merge).
    x = x_ref[...].reshape(tb * tc, s2)
    # Single MXU matmul: M = TB*TC, K = S2 (=256), N = 4*S2 (lane dense),
    # bf16 operands with f32 accumulation.
    y = jnp.dot(x, w_ref[...], preferred_element_type=jnp.float32)  # (TB*TC, 4*S2)
    for f in range(4):                          # lane-aligned 256-wide slices
        yf = y[:, f * s2:(f + 1) * s2]          # (TB*TC, S2)
        o_ref[:, f, :, :] = yf.reshape(tb, tc, s2).astype(o_ref.dtype)


# ------------------------------ tile selection -------------------------------

def _choose_tiles(B, C, *, plane_cap=512):
    """Pick (TB, TC) so TB*TC planes per step ~ plane_cap and the grid has
    at least 2 steps when possible (keeps both v7x TensorCores busy)."""
    # Channel tile: full C if it fits, else the largest divisor <= plane_cap,
    # preferring multiples of 8 (unmasked sublane tiles).
    if C <= plane_cap:
        TC = C
    else:
        TC = None
        for t in range(plane_cap, 0, -1):
            if C % t == 0 and t % 8 == 0:
                TC = t
                break
        if TC is None:
            for t in range(plane_cap, 0, -1):
                if C % t == 0:
                    TC = t
                    break
    # Batch tile: fold batch into the matmul M dimension up to plane_cap planes.
    TB = 1
    for t in range(B, 0, -1):
        if B % t == 0 and t * TC <= plane_cap:
            TB = t
            break
    # Guarantee >= 2 grid steps when possible (v7x has 2 TensorCores).
    if (B // TB) * (C // TC) < 2 and TB > 1:
        for t in range(TB - 1, 0, -1):
            if B % t == 0:
                TB = t
                break
    return TB, TC


# --------------------------------- wrapper -----------------------------------

def fad_head(x, D, base, learnable, *, plane_cap=512,
             compute_dtype=jnp.bfloat16, W=None):
    """x: (B, C, S, S) float32 -> (B, 4*C, S, S) float32."""
    B, C, S, _ = x.shape
    S2 = S * S
    TB, TC = _choose_tiles(B, C, plane_cap=plane_cap)

    if W is None:
        W = make_fad_operator(D, base, learnable, compute_dtype=compute_dtype)

    x_flat = x.reshape(B, C, S2).astype(compute_dtype)     # free reshape + cast

    out = pl.pallas_call(
        fad_kernel,
        out_shape=jax.ShapeDtypeStruct((B, 4, C, S2), jnp.float32),
        grid_spec=pltpu.PrefetchScalarGridSpec(
            num_scalar_prefetch=0,
            grid=(B // TB, C // TC),
            in_specs=[
                pl.BlockSpec((TB, TC, S2), lambda b, c: (b, c, 0)),
                pl.BlockSpec((S2, 4 * S2), lambda b, c: (0, 0)),
            ],
            out_specs=pl.BlockSpec((TB, 4, TC, S2), lambda b, c: (b, 0, c, 0)),
        ),
        compiler_params=pltpu.CompilerParams(
            dimension_semantics=("parallel", "parallel"),
        ),
    )(x_flat, W)

    # (B, 4, C, S2) -> (B, 4*C, S, S): contiguous reshape, channel = f*C + c,
    # matching torch.cat([y_low, y_mid, y_high, y_all], dim=1).  No transpose.
    return out.reshape(B, 4 * C, S, S)


# ------------------------------- reference ----------------------------------

def fad_head_ref(x, D, base, learnable):
    """Pure-JAX f32 reference mirroring the PyTorch forward."""
    Dt = D.T
    x_freq = jnp.einsum("ij,bcjk,kl->bcil", D, x, Dt)
    ys = []
    for i in range(4):
        filt = base[i] + 2.0 * jax.nn.sigmoid(learnable[i]) - 1.0
        y = jnp.einsum("ij,bcjk,kl->bcil", Dt, x_freq * filt, D)
        ys.append(y)
    return jnp.concatenate(ys, axis=1)


# --------------------------------- driver ------------------------------------

if __name__ == "__main__":
    B, C, S = 2, 4, 16
    key = jax.random.PRNGKey(0)
    kx, kw = jax.random.split(key)

    x = jax.random.normal(kx, (B, C, S, S), dtype=jnp.float32)
    D, base, learnable = make_fad_params(S, kw)

    out = jax.block_until_ready(fad_head(x, D, base, learnable))
    ref = jax.block_until_ready(fad_head_ref(x, D, base, learnable))

    assert out.shape == (B, 4 * C, S, S), out.shape
    # bf16 MXU operands with f32 accumulation: tolerance sized for bf16
    # operand rounding (K=256); the f32-path discrepancy is ~1e-4.
    np.testing.assert_allclose(np.asarray(out), np.asarray(ref),
                               rtol=3e-2, atol=3e-2)

    print("KERNEL_OK")
</pallas_src>

<mosaic_0001>
module attributes {stable_mosaic.version = 11 : i64} {
  func.func @fad_kernel(%arg0: i32, %arg1: i32, %arg2: memref<1x4x256xbf16, #tpu.memory_space<vmem>>, %arg3: memref<256x1024xbf16, #tpu.memory_space<vmem>>, %arg4: memref<1x4x4x256xf32, #tpu.memory_space<vmem>>) attributes {dimension_semantics = [#tpu.dimension_semantics<parallel>, #tpu.dimension_semantics<parallel>], iteration_bounds = array<i64: 2, 1>, scalar_prefetch = 0 : i64, scratch_operands = 0 : i64, tpu.core_type = #tpu.core_type<tc>, window_params = [{transform_indices = @transform_0, window_bounds = array<i64: 1, 4, 256>}, {pipeline_mode = #tpu.pipeline_mode<synchronous>, transform_indices = @transform_1, window_bounds = array<i64: 256, 1024>}, {transform_indices = @transform_2, window_bounds = array<i64: 1, 4, 4, 256>}]} {
    %c0 = arith.constant 0 : index
    %c0_0 = arith.constant 0 : index
    %c0_1 = arith.constant 0 : index
    %0 = vector.load %arg2[%c0, %c0_0, %c0_1] : memref<1x4x256xbf16, #tpu.memory_space<vmem>>, vector<1x4x256xbf16>
    %1 = vector.shape_cast %0 : vector<1x4x256xbf16> to vector<4x256xbf16>
    %c0_2 = arith.constant 0 : index
    %c0_3 = arith.constant 0 : index
    %2 = vector.load %arg3[%c0_2, %c0_3] : memref<256x1024xbf16, #tpu.memory_space<vmem>>, vector<256x1024xbf16>
    %cst = arith.constant dense<0.000000e+00> : vector<4x1024xf32>
    %3 = tpu.matmul %1, %2, %cst {dimension_numbers = #tpu.dot_dimension_numbers<[1], [0], [0], [1], [0, 0, 1, 1], [], []>} : vector<4x256xbf16>, vector<256x1024xbf16>, vector<4x1024xf32> -> vector<4x1024xf32>
    %4 = vector.extract_strided_slice %3 {offsets = [0, 0], sizes = [4, 256], strides = [1, 1]} : vector<4x1024xf32> to vector<4x256xf32>
    %5 = vector.shape_cast %4 : vector<4x256xf32> to vector<1x4x256xf32>
    %c0_4 = arith.constant 0 : index
    %c0_5 = arith.constant 0 : index
    %c0_6 = arith.constant 0 : index
    %c0_7 = arith.constant 0 : index
    %6 = vector.load %arg4[%c0_4, %c0_5, %c0_6, %c0_7] : memref<1x4x4x256xf32, #tpu.memory_space<vmem>>, vector<1x1x4x256xf32>
    %7 = vector.shape_cast %6 : vector<1x1x4x256xf32> to vector<1x4x256xf32>
    %8 = vector.shape_cast %5 : vector<1x4x256xf32> to vector<1x1x4x256xf32>
    tpu.vector_store %arg4[%c0_4, %c0_5, %c0_6, %c0_7], %8 {strides = array<i32>} : memref<1x4x4x256xf32, #tpu.memory_space<vmem>>, vector<1x1x4x256xf32>,
    %9 = vector.extract_strided_slice %3 {offsets = [0, 256], sizes = [4, 256], strides = [1, 1]} : vector<4x1024xf32> to vector<4x256xf32>
    %10 = vector.shape_cast %9 : vector<4x256xf32> to vector<1x4x256xf32>
    %c0_8 = arith.constant 0 : index
    %c1 = arith.constant 1 : index
    %c0_9 = arith.constant 0 : index
    %c0_10 = arith.constant 0 : index
    %11 = vector.load %arg4[%c0_8, %c1, %c0_9, %c0_10] : memref<1x4x4x256xf32, #tpu.memory_space<vmem>>, vector<1x1x4x256xf32>
    %12 = vector.shape_cast %11 : vector<1x1x4x256xf32> to vector<1x4x256xf32>
    %13 = vector.shape_cast %10 : vector<1x4x256xf32> to vector<1x1x4x256xf32>
    tpu.vector_store %arg4[%c0_8, %c1, %c0_9, %c0_10], %13 {strides = array<i32>} : memref<1x4x4x256xf32, #tpu.memory_space<vmem>>, vector<1x1x4x256xf32>,
    %14 = vector.extract_strided_slice %3 {offsets = [0, 512], sizes = [4, 256], strides = [1, 1]} : vector<4x1024xf32> to vector<4x256xf32>
    %15 = vector.shape_cast %14 : vector<4x256xf32> to vector<1x4x256xf32>
    %c0_11 = arith.constant 0 : index
    %c2 = arith.constant 2 : index
    %c0_12 = arith.constant 0 : index
    %c0_13 = arith.constant 0 : index
    %16 = vector.load %arg4[%c0_11, %c2, %c0_12, %c0_13] : memref<1x4x4x256xf32, #tpu.memory_space<vmem>>, vector<1x1x4x256xf32>
    %17 = vector.shape_cast %16 : vector<1x1x4x256xf32> to vector<1x4x256xf32>
    %18 = vector.shape_cast %15 : vector<1x4x256xf32> to vector<1x1x4x256xf32>
    tpu.vector_store %arg4[%c0_11, %c2, %c0_12, %c0_13], %18 {strides = array<i32>} : memref<1x4x4x256xf32, #tpu.memory_space<vmem>>, vector<1x1x4x256xf32>,
    %19 = vector.extract_strided_slice %3 {offsets = [0, 768], sizes = [4, 256], strides = [1, 1]} : vector<4x1024xf32> to vector<4x256xf32>
    %20 = vector.shape_cast %19 : vector<4x256xf32> to vector<1x4x256xf32>
    %c0_14 = arith.constant 0 : index
    %c3 = arith.constant 3 : index
    %c0_15 = arith.constant 0 : index
    %c0_16 = arith.constant 0 : index
    %21 = vector.load %arg4[%c0_14, %c3, %c0_15, %c0_16] : memref<1x4x4x256xf32, #tpu.memory_space<vmem>>, vector<1x1x4x256xf32>
    %22 = vector.shape_cast %21 : vector<1x1x4x256xf32> to vector<1x4x256xf32>
    %23 = vector.shape_cast %20 : vector<1x4x256xf32> to vector<1x1x4x256xf32>
    tpu.vector_store %arg4[%c0_14, %c3, %c0_15, %c0_16], %23 {strides = array<i32>} : memref<1x4x4x256xf32, #tpu.memory_space<vmem>>, vector<1x1x4x256xf32>,
    return
  }
  func.func @transform_0(%arg0: i32, %arg1: i32) -> (i32, i32, i32) {
    %c0_i32 = arith.constant 0 : i32
    %c0_i32_0 = arith.constant 0 : i32
    return %arg0, %arg1, %c0_i32 : i32, i32, i32
  }
  func.func @transform_1(%arg0: i32, %arg1: i32) -> (i32, i32) {
    %c0_i32 = arith.constant 0 : i32
    %c0_i32_0 = arith.constant 0 : i32
    %c0_i32_1 = arith.constant 0 : i32
    return %c0_i32, %c0_i32_0 : i32, i32
  }
  func.func @transform_2(%arg0: i32, %arg1: i32) -> (i32, i32, i32, i32) {
    %c0_i32 = arith.constant 0 : i32
    %c0_i32_0 = arith.constant 0 : i32
    %c0_i32_1 = arith.constant 0 : i32
    return %arg0, %c0_i32, %arg1, %c0_i32_0 : i32, i32, i32, i32
  }
}

</mosaic_0001>

<llo_original>
// kernel: tpu_custom_call.1
$region0: #{tpu_custom_call.1}
  #allocation0 [shape = 'u32[]', space=smem, size = 0x4, offset = 0x4, fixed_abs, tag = 'smem constant byte address 0x4 - core index']
  #allocation1 [shape = 'u32[144,128]{1,0:T(1,128)}', space=vmem, size = 0x12000, scoped, tag = 'internal scratch']
  %s0 = inlined_call_operand.hbm [shape: bf16[2,4,256], index: 0, kind: input, shape index: {}]
  %s1 = inlined_call_operand.hbm [shape: bf16[256,1024], index: 1, kind: input, shape index: {}]
  %s2 = inlined_call_operand.hbm [shape: f32[2,4,4,256], index: 2, kind: output, shape index: {}]
  %s3 = sld [smem:[#allocation0]]
  $region49: #{tpu_custom_call.1} parent=0
    _
  %s5 = ssub.s32 1, %s3
  %s6 = scalar_select 0, %s5, %s3
  $region1: #{tpu_custom_call.1} parent=0
    #allocation2 [shape = 'u8[4096]{0}', space=vmem, size = 0x1000, scoped, tag = 'input window, operand 0']
    #allocation3 [shape = 's32[2]{0}', space=sflag, size = 0x8, scoped, tag = 'scoped memory for tpu_custom_call.1']
    #allocation4 [shape = 's32[2]{0}', space=sflag, size = 0x8, scoped, tag = 'scoped memory for tpu_custom_call.1']
    #allocation5 [shape = 'u8[524288]{0}', space=vmem, size = 0x80000, scoped, tag = 'input window, operand 1, single buffered']
    #allocation6 [shape = 's32[1]{0}', space=sflag, size = 0x4, scoped, tag = 'scoped memory for tpu_custom_call.1']
    #allocation7 [shape = 'u8[32768]{0}', space=vmem, size = 0x8000, scoped, tag = 'output window, operand 0']
    %7 = vsyncpa [#allocation3], 0
    %s8 = scalar_lea.sflag [#allocation3], 1
    %9 = vsyncpa %s8, 0
    %10 = vsyncpa [#allocation6], 0
    %11 = vsyncpa [#allocation4], 0
    %s12 = scalar_lea.sflag [#allocation4], 1
    %13 = vsyncpa %s12, 0
    loop: start=0, step=1, limit=4
    $region2: #{tpu_custom_call.1} parent=1 // loop_pre_header
      _
    $region3: #{tpu_custom_call.1} parent=1 // loop_header
      %s15 = sphi 0, %s19
      %p16 = scmp.ge.s32.totalorder %s15, 4
      %s22 = sphi 0, %s34
      %s23 = sphi 0, %s30
      %s24 = sphi 0, %s22
      %s25 = sphi 0, %s23
      %s26 = sphi 0, %s24
      %s27 = sphi 0, %s25
      %s39 = sphi 0, %s41
      %s42 = sphi 0, %s39
      %s43 = sphi 0, %s42
      %s59 = sphi 0, %s43
      %s63 = sphi 0, %s63
      %s65 = sphi 0, %s63
      %s66 = sphi 0, %s65
      %s80 = sphi 0, %s66
      %s88 = sphi 0, %s90
      %s91 = sphi 0, %s88
      %s92 = sphi 0, %s91
      %s108 = sphi 0, %s92
    $region4: #{tpu_custom_call.1} parent=1 // loop_header_branch
      %18 = sbr.rel (%p16) target = $region8
    $region5: #{tpu_custom_call.1} parent=1 // loop_body
      %s20 = ssub.s32 %s15, 1
      %s21 = ssub.s32 %s15, 2
      %s28 = sadd.s32 1, %s23
      %p29 = scmp.ge.s32.totalorder %s28, 1
      %s30 = scalar_select %p29, 0, %s28
      %s31 = sadd.s32 1, %s22
      %s32 = scalar_select %p29, %s31, %s22
      %p33 = scmp.ge.s32.totalorder %s32, 2
      %s34 = scalar_select %p33, 0, %s32
      %s35 = ssub.s32 %s22, %s34
      %s36 = ssub.s32 %s23, %s30
      %s37 = sor.u32 %s35, %s36
      %p38 = scmp.eq.s32.totalorder %s37, 0
      %s40 = sadd.s32 %s39, 1
      %s41 = scalar_select %p38, %s39, %s40
      %p44 = pneg %p38
      %p45 = scmp.eq.s32.totalorder %s15, 1
      %p46 = por %p44, %p45
      %p47 = scmp.ne.s32.totalorder %s39, %s42
      %p48 = scmp.eq.s32.totalorder %s15, 0
      %p49 = por %p47, %p48
      %p50 = scmp.ne.s32.totalorder %s39, %s42
      %p51 = scmp.eq.s32.totalorder %s20, 1
      %p52 = por %p50, %p51
      %p53 = scmp.ne.s32.totalorder %s42, %s43
      %p54 = scmp.eq.s32.totalorder %s20, 0
      %p55 = por %p53, %p54
      %p56 = scmp.ne.s32.totalorder %s42, %s43
      %p57 = scmp.eq.s32.totalorder %s21, 1
      %p58 = por %p56, %p57
      %p60 = scmp.ne.s32.totalorder %s43, %s59
      %p61 = scmp.eq.s32.totalorder %s21, 0
      %p62 = por %p60, %p61
      %s64 = sadd.s32 %s63, 1
      %p67 = scmp.eq.s32.totalorder %s15, 1
      %p68 = scmp.ne.s32.totalorder %s63, %s65
      %p69 = scmp.eq.s32.totalorder %s15, 0
      %p70 = por %p68, %p69
      %p71 = scmp.ne.s32.totalorder %s63, %s65
      %p72 = scmp.eq.s32.totalorder %s20, 1
      %p73 = por %p71, %p72
      %p74 = scmp.ne.s32.totalorder %s65, %s66
      %p75 = scmp.eq.s32.totalorder %s20, 0
      %p76 = por %p74, %p75
      %p77 = scmp.ne.s32.totalorder %s65, %s66
      %p78 = scmp.eq.s32.totalorder %s21, 1
      %p79 = por %p77, %p78
      %p81 = scmp.ne.s32.totalorder %s66, %s80
      %p82 = scmp.eq.s32.totalorder %s21, 0
      %p83 = por %p81, %p82
      %s84 = ssub.s32 %s22, %s34
      %s85 = ssub.s32 %s23, %s30
      %s86 = sor.u32 %s84, %s85
      %p87 = scmp.eq.s32.totalorder %s86, 0
      %s89 = sadd.s32 %s88, 1
      %s90 = scalar_select %p87, %s88, %s89
      %p93 = pneg %p87
      %p94 = scmp.eq.s32.totalorder %s15, 1
      %p95 = por %p93, %p94
      %p96 = scmp.ne.s32.totalorder %s88, %s91
      %p97 = scmp.eq.s32.totalorder %s15, 0
      %p98 = por %p96, %p97
      %p99 = scmp.ne.s32.totalorder %s88, %s91
      %p100 = scmp.eq.s32.totalorder %s20, 1
      %p101 = por %p99, %p100
      %p102 = scmp.ne.s32.totalorder %s91, %s92
      %p103 = scmp.eq.s32.totalorder %s20, 0
      %p104 = por %p102, %p103
      %p105 = scmp.ne.s32.totalorder %s91, %s92
      %p106 = scmp.eq.s32.totalorder %s21, 1
      %p107 = por %p105, %p106
      %p109 = scmp.ne.s32.totalorder %s92, %s108
      %p110 = scmp.eq.s32.totalorder %s21, 0
      %p111 = por %p109, %p110
      %p112 = scmp.le.s32.totalorder 1, %s15
      %p113 = scmp.lt.s32.totalorder %s15, 3
      %p114 = pnand %p112, %p113
      %p115 = pneg %p114
      // Predicated region
      $region9: #{tpu_custom_call.1} parent=5 // pred_check
        _
      $region10: #{tpu_custom_call.1} parent=5 // pred_check_branch
        %117 = sbr.rel (%p114) target = $region12
      $region11: #{tpu_custom_call.1} parent=5 // pred_region
        %s118 = ssub.s32 %s15, 1
        // Predicated region
        $region13: #{tpu_custom_call.1} parent=11 // pred_check
          %p119 = pneg %p76
        $region14: #{tpu_custom_call.1} parent=11 // pred_check_branch
          %121 = sbr.rel (%p119) target = $region16
        $region15: #{tpu_custom_call.1} parent=11 // pred_region
          %s123 = ssub.s32 16384, 16384
          %124 = vsyncadd [#allocation6], %s123
          %s125 = sshll.u32 [#allocation5], 4
          %s126 = int_to_ptr.vmem [resolvable:$true] %s125
          %131 = dma.hbm_to_vmem [thread:$0]  %s1, 16384, %s126, [#allocation6], 512, 512, 32
        $region16: #{tpu_custom_call.1} parent=11 // pred_fallthru
          _
      $region12: #{tpu_custom_call.1} parent=5 // pred_fallthru
        _
      %p132 = scmp.lt.s32.totalorder %s15, 2
      // Predicated region
      $region17: #{tpu_custom_call.1} parent=5 // pred_check
        %p133 = pneg %p132
      $region18: #{tpu_custom_call.1} parent=5 // pred_check_branch
        %135 = sbr.rel (%p133) target = $region20
      $region19: #{tpu_custom_call.1} parent=5 // pred_region
        // Predicated region
        $region21: #{tpu_custom_call.1} parent=19 // pred_check
          %p136 = pneg %p49
        $region22: #{tpu_custom_call.1} parent=19 // pred_check_branch
          %138 = sbr.rel (%p136) target = $region24
        $region23: #{tpu_custom_call.1} parent=19 // pred_region
          %s139 = sand.u32 %s39, 1
          %s140 = scalar_lea.sflag [#allocation3], %s139
          %s141 = sand.u32 %s39, 1
          %s142 = smul.addr %s141, 4
          %s143 = scalar_lea.vmem [#allocation2], %s142
          %s145 = ssub.s32 64, 64
          %146 = vsyncadd %s140, %s145
          %s147 = smul.addr %s23, 2
          %s148 = smul.addr %s22, 2
          %s149 = sadd.s32 %s147, %s148
          %s150 = smul.addr %s149, 32
          %s151 = scalar_lea.hbm %s0, %s150
          %s153 = sshll.u32 %s143, 4
          %s154 = int_to_ptr.vmem [resolvable:$true] %s153
          %156 = dma.hbm_to_vmem [thread:$0]  %s151, 64, %s154, %s140
        $region24: #{tpu_custom_call.1} parent=19 // pred_fallthru
          _
      $region20: #{tpu_custom_call.1} parent=5 // pred_fallthru
        _
      %p157 = scmp.le.s32.totalorder 1, %s15
      %p158 = scmp.lt.s32.totalorder %s15, 3
      %p159 = pnand %p157, %p158
      %p160 = pneg %p159
      // Predicated region
      $region25: #{tpu_custom_call.1} parent=5 // pred_check
        _
      $region26: #{tpu_custom_call.1} parent=5 // pred_check_branch
        %162 = sbr.rel (%p159) target = $region28
      $region27: #{tpu_custom_call.1} parent=5 // pred_region
        %s163 = ssub.s32 %s15, 1
        %s164 = sand.u32 %s42, 1
        %s165 = scalar_lea.sflag [#allocation3], %s164
        %s166 = sand.u32 %s42, 1
        %s167 = smul.addr %s166, 4
        %s168 = scalar_lea.vmem [#allocation2], %s167
        // Predicated region
        $region29: #{tpu_custom_call.1} parent=27 // pred_check
          %p169 = pneg %p55
        $region30: #{tpu_custom_call.1} parent=27 // pred_check_branch
          %171 = sbr.rel (%p169) target = $region32
        $region31: #{tpu_custom_call.1} parent=27 // pred_region
          %172 = dma.done %s165, 64
        $region32: #{tpu_custom_call.1} parent=27 // pred_fallthru
          _
        // Predicated region
        $region33: #{tpu_custom_call.1} parent=27 // pred_check
          %p173 = pneg %p76
        $region34: #{tpu_custom_call.1} parent=27 // pred_check_branch
          %175 = sbr.rel (%p173) target = $region36
        $region35: #{tpu_custom_call.1} parent=27 // pred_region
          %176 = dma.done [#allocation6], 16384
        $region36: #{tpu_custom_call.1} parent=27 // pred_fallthru
          _
        %s177 = sand.u32 %s42, 1
        %s178 = scalar_lea.sflag [#allocation3], %s177
        %s179 = sand.u32 %s42, 1
        %s180 = smul.addr %s179, 4
        %s181 = scalar_lea.vmem [#allocation2], %s180
        %p182 = pneg %p55
        %p183 = pneg %p52
        %p184 = pneg %p76
        %p185 = pneg %p73
        %p186 = pneg %p104
        %p187 = pneg %p101
        %s188 = sand.u32 %s91, 1
        %s189 = scalar_lea.sflag [#allocation4], %s188
        %s190 = sand.u32 %s91, 1
        %s191 = smul.addr %s190, 32
        %s192 = scalar_lea.vmem [#allocation7], %s191
        %v193 = vld [vmem:[%s168] sm:$0xf]
        %v194 = vld [vmem:[#allocation5] sm:$0xff]
        %v195 = vld [vmem:[#allocation5 + $0x8] sm:$0xff]
        %v196 = vld [vmem:[#allocation5 + $0x10] sm:$0xff]
        %v197 = vld [vmem:[#allocation5 + $0x18] sm:$0xff]
        %v198 = vld [vmem:[#allocation5 + $0x20] sm:$0xff]
        %v199 = vld [vmem:[#allocation5 + $0x28] sm:$0xff]
        %v200 = vld [vmem:[#allocation5 + $0x30] sm:$0xff]
        %v201 = vld [vmem:[#allocation5 + $0x38] sm:$0xff]
        %v202 = vld [vmem:[#allocation5 + $0x40] sm:$0xff]
        %v203 = vld [vmem:[#allocation5 + $0x48] sm:$0xff]
        %v204 = vld [vmem:[#allocation5 + $0x50] sm:$0xff]
        %v205 = vld [vmem:[#allocation5 + $0x58] sm:$0xff]
        %v206 = vld [vmem:[#allocation5 + $0x60] sm:$0xff]
        %v207 = vld [vmem:[#allocation5 + $0x68] sm:$0xff]
        %v208 = vld [vmem:[#allocation5 + $0x70] sm:$0xff]
        %v209 = vld [vmem:[#allocation5 + $0x78] sm:$0xff]
        %v210 = vld [vmem:[#allocation5 + $0x80] sm:$0xff]
        %v211 = vld [vmem:[#allocation5 + $0x88] sm:$0xff]
        %v212 = vld [vmem:[#allocation5 + $0x90] sm:$0xff]
        %v213 = vld [vmem:[#allocation5 + $0x98] sm:$0xff]
        %v214 = vld [vmem:[#allocation5 + $0xa0] sm:$0xff]
        %v215 = vld [vmem:[#allocation5 + $0xa8] sm:$0xff]
        %v216 = vld [vmem:[#allocation5 + $0xb0] sm:$0xff]
        %v217 = vld [vmem:[#allocation5 + $0xb8] sm:$0xff]
        %v218 = vld [vmem:[#allocation5 + $0xc0] sm:$0xff]
        %v219 = vld [vmem:[#allocation5 + $0xc8] sm:$0xff]
        %v220 = vld [vmem:[#allocation5 + $0xd0] sm:$0xff]
        %v221 = vld [vmem:[#allocation5 + $0xd8] sm:$0xff]
        %v222 = vld [vmem:[#allocation5 + $0xe0] sm:$0xff]
        %v223 = vld [vmem:[#allocation5 + $0xe8] sm:$0xff]
        %v224 = vld [vmem:[#allocation5 + $0xf0] sm:$0xff]
        %v225 = vld [vmem:[#allocation5 + $0xf8] sm:$0xff]
        %v226 = vld [vmem:[#allocation5 + $0x100] sm:$0xff]
        %v227 = vld [vmem:[#allocation5 + $0x108] sm:$0xff]
        %v228 = vld [vmem:[#allocation5 + $0x110] sm:$0xff]
        %v229 = vld [vmem:[#allocation5 + $0x118] sm:$0xff]
        %v230 = vld [vmem:[#allocation5 + $0x120] sm:$0xff]
        %v231 = vld [vmem:[#allocation5 + $0x128] sm:$0xff]
        %v232 = vld [vmem:[#allocation5 + $0x130] sm:$0xff]
        %v233 = vld [vmem:[#allocation5 + $0x138] sm:$0xff]
        %v234 = vld [vmem:[#allocation5 + $0x140] sm:$0xff]
        %v235 = vld [vmem:[#allocation5 + $0x148] sm:$0xff]
        %v236 = vld [vmem:[#allocation5 + $0x150] sm:$0xff]
        %v237 = vld [vmem:[#allocation5 + $0x158] sm:$0xff]
        %v238 = vld [vmem:[#allocation5 + $0x160] sm:$0xff]
        %v239 = vld [vmem:[#allocation5 + $0x168] sm:$0xff]
        %v240 = vld [vmem:[#allocation5 + $0x170] sm:$0xff]
        %v241 = vld [vmem:[#allocation5 + $0x178] sm:$0xff]
        %v242 = vld [vmem:[#allocation5 + $0x180] sm:$0xff]
        %v243 = vld [vmem:[#allocation5 + $0x188] sm:$0xff]
        %v244 = vld [vmem:[#allocation5 + $0x190] sm:$0xff]
        %v245 = vld [vmem:[#allocation5 + $0x198] sm:$0xff]
        %v246 = vld [vmem:[#allocation5 + $0x1a0] sm:$0xff]
        %v247 = vld [vmem:[#allocation5 + $0x1a8] sm:$0xff]
        %v248 = vld [vmem:[#allocation5 + $0x1b0] sm:$0xff]
        %v249 = vld [vmem:[#allocation5 + $0x1b8] sm:$0xff]
        %v250 = vld [vmem:[#allocation5 + $0x1c0] sm:$0xff]
        %v251 = vld [vmem:[#allocation5 + $0x1c8] sm:$0xff]
        %v252 = vld [vmem:[#allocation5 + $0x1d0] sm:$0xff]
        %v253 = vld [vmem:[#allocation5 + $0x1d8] sm:$0xff]
        %v254 = vld [vmem:[#allocation5 + $0x1e0] sm:$0xff]
        %v255 = vld [vmem:[#allocation5 + $0x1e8] sm:$0xff]
        %v256 = vld [vmem:[#allocation5 + $0x1f0] sm:$0xff]
        %v257 = vld [vmem:[#allocation5 + $0x1f8] sm:$0xff]
        %v258 = vld [vmem:[#allocation5 + $0x200] sm:$0xff]
        %v259 = vld [vmem:[#allocation5 + $0x208] sm:$0xff]
        %v260 = vld [vmem:[#allocation5 + $0x210] sm:$0xff]
        %v261 = vld [vmem:[#allocation5 + $0x218] sm:$0xff]
        %v262 = vld [vmem:[#allocation5 + $0x220] sm:$0xff]
        %v263 = vld [vmem:[#allocation5 + $0x228] sm:$0xff]
        %v264 = vld [vmem:[#allocation5 + $0x230] sm:$0xff]
        %v265 = vld [vmem:[#allocation5 + $0x238] sm:$0xff]
        %v266 = vld [vmem:[#allocation5 + $0x240] sm:$0xff]
        %v267 = vld [vmem:[#allocation5 + $0x248] sm:$0xff]
        %v268 = vld [vmem:[#allocation5 + $0x250] sm:$0xff]
        %v269 = vld [vmem:[#allocation5 + $0x258] sm:$0xff]
        %v270 = vld [vmem:[#allocation5 + $0x260] sm:$0xff]
        %v271 = vld [vmem:[#allocation5 + $0x268] sm:$0xff]
        %v272 = vld [vmem:[#allocation5 + $0x270] sm:$0xff]
        %v273 = vld [vmem:[#allocation5 + $0x278] sm:$0xff]
        %v274 = vld [vmem:[#allocation5 + $0x280] sm:$0xff]
        %v275 = vld [vmem:[#allocation5 + $0x288] sm:$0xff]
        %v276 = vld [vmem:[#allocation5 + $0x290] sm:$0xff]
        %v277 = vld [vmem:[#allocation5 + $0x298] sm:$0xff]
        %v278 = vld [vmem:[#allocation5 + $0x2a0] sm:$0xff]
        %v279 = vld [vmem:[#allocation5 + $0x2a8] sm:$0xff]
        %v280 = vld [vmem:[#allocation5 + $0x2b0] sm:$0xff]
        %v281 = vld [vmem:[#allocation5 + $0x2b8] sm:$0xff]
        %v282 = vld [vmem:[#allocation5 + $0x2c0] sm:$0xff]
        %v283 = vld [vmem:[#allocation5 + $0x2c8] sm:$0xff]
        %v284 = vld [vmem:[#allocation5 + $0x2d0] sm:$0xff]
        %v285 = vld [vmem:[#allocation5 + $0x2d8] sm:$0xff]
        %v286 = vld [vmem:[#allocation5 + $0x2e0] sm:$0xff]
        %v287 = vld [vmem:[#allocation5 + $0x2e8] sm:$0xff]
        %v288 = vld [vmem:[#allocation5 + $0x2f0] sm:$0xff]
        %v289 = vld [vmem:[#allocation5 + $0x2f8] sm:$0xff]
        %v290 = vld [vmem:[#allocation5 + $0x300] sm:$0xff]
        %v291 = vld [vmem:[#allocation5 + $0x308] sm:$0xff]
        %v292 = vld [vmem:[#allocation5 + $0x310] sm:$0xff]
        %v293 = vld [vmem:[#allocation5 + $0x318] sm:$0xff]
        %v294 = vld [vmem:[#allocation5 + $0x320] sm:$0xff]
        %v295 = vld [vmem:[#allocation5 + $0x328] sm:$0xff]
        %v296 = vld [vmem:[#allocation5 + $0x330] sm:$0xff]
        %v297 = vld [vmem:[#allocation5 + $0x338] sm:$0xff]
        %v298 = vld [vmem:[#allocation5 + $0x340] sm:$0xff]
        %v299 = vld [vmem:[#allocation5 + $0x348] sm:$0xff]
        %v300 = vld [vmem:[#allocation5 + $0x350] sm:$0xff]
        %v301 = vld [vmem:[#allocation5 + $0x358] sm:$0xff]
        %v302 = vld [vmem:[#allocation5 + $0x360] sm:$0xff]
        %v303 = vld [vmem:[#allocation5 + $0x368] sm:$0xff]
        %v304 = vld [vmem:[#allocation5 + $0x370] sm:$0xff]
        %v305 = vld [vmem:[#allocation5 + $0x378] sm:$0xff]
        %v306 = vld [vmem:[#allocation5 + $0x380] sm:$0xff]
        %v307 = vld [vmem:[#allocation5 + $0x388] sm:$0xff]
        %v308 = vld [vmem:[#allocation5 + $0x390] sm:$0xff]
        %v309 = vld [vmem:[#allocation5 + $0x398] sm:$0xff]
        %v310 = vld [vmem:[#allocation5 + $0x3a0] sm:$0xff]
        %v311 = vld [vmem:[#allocation5 + $0x3a8] sm:$0xff]
        %v312 = vld [vmem:[#allocation5 + $0x3b0] sm:$0xff]
        %v313 = vld [vmem:[#allocation5 + $0x3b8] sm:$0xff]
        %v314 = vld [vmem:[#allocation5 + $0x3c0] sm:$0xff]
        %v315 = vld [vmem:[#allocation5 + $0x3c8] sm:$0xff]
        %v316 = vld [vmem:[#allocation5 + $0x3d0] sm:$0xff]
        %v317 = vld [vmem:[#allocation5 + $0x3d8] sm:$0xff]
        %v318 = vld [vmem:[#allocation5 + $0x3e0] sm:$0xff]
        %v319 = vld [vmem:[#allocation5 + $0x3e8] sm:$0xff]
        %v320 = vld [vmem:[#allocation5 + $0x3f0] sm:$0xff]
        %v321 = vld [vmem:[#allocation5 + $0x3f8] sm:$0xff]
        %v324 = vunpack.c.l.s4 1983009808
        %v325 = vunpack.c.0.s8 %v324
        %v326 = vlaneseq
        %v327 = vshrl.u32 %v326, 7
        %v328 = vsub.s32 %v325, %v327
        %v329 = vrot.slane %v193, %v328
        %v330 = vcombine.high %v329, %v329
        %v461 = vunpack.c.l.b16 %v194
        %v462 = vunpack.c.h.b16 %v194
        %v463 = vunpack.c.l.b16 %v195
        %v464 = vunpack.c.h.b16 %v195
        %v465 = vunpack.c.l.b16 %v196
        %v466 = vunpack.c.h.b16 %v196
        %v467 = vunpack.c.l.b16 %v197
        %v468 = vunpack.c.h.b16 %v197
        %v469 = vunpack.c.l.b16 %v198
        %v470 = vunpack.c.h.b16 %v198
        %v471 = vunpack.c.l.b16 %v199
        %v472 = vunpack.c.h.b16 %v199
        %v473 = vunpack.c.l.b16 %v200
        %v474 = vunpack.c.h.b16 %v200
        %v475 = vunpack.c.l.b16 %v201
        %v476 = vunpack.c.h.b16 %v201
        %v477 = vunpack.c.l.b16 %v202
        %v478 = vunpack.c.h.b16 %v202
        %v479 = vunpack.c.l.b16 %v203
        %v480 = vunpack.c.h.b16 %v203
        %v481 = vunpack.c.l.b16 %v204
        %v482 = vunpack.c.h.b16 %v204
        %v483 = vunpack.c.l.b16 %v205
        %v484 = vunpack.c.h.b16 %v205
        %v485 = vunpack.c.l.b16 %v206
        %v486 = vunpack.c.h.b16 %v206
        %v487 = vunpack.c.l.b16 %v207
        %v488 = vunpack.c.h.b16 %v207
        %v489 = vunpack.c.l.b16 %v208
        %v490 = vunpack.c.h.b16 %v208
        %v491 = vunpack.c.l.b16 %v209
        %v492 = vunpack.c.h.b16 %v209
        %v493 = vunpack.c.l.b16 %v210
        %v494 = vunpack.c.h.b16 %v210
        %v495 = vunpack.c.l.b16 %v211
        %v496 = vunpack.c.h.b16 %v211
        %v497 = vunpack.c.l.b16 %v212
        %v498 = vunpack.c.h.b16 %v212
        %v499 = vunpack.c.l.b16 %v213
        %v500 = vunpack.c.h.b16 %v213
        %v501 = vunpack.c.l.b16 %v214
        %v502 = vunpack.c.h.b16 %v214
        %v503 = vunpack.c.l.b16 %v215
        %v504 = vunpack.c.h.b16 %v215
        %v505 = vunpack.c.l.b16 %v216
        %v506 = vunpack.c.h.b16 %v216
        %v507 = vunpack.c.l.b16 %v217
        %v508 = vunpack.c.h.b16 %v217
        %v509 = vunpack.c.l.b16 %v218
        %v510 = vunpack.c.h.b16 %v218
        %v511 = vunpack.c.l.b16 %v219
        %v512 = vunpack.c.h.b16 %v219
        %v513 = vunpack.c.l.b16 %v220
        %v514 = vunpack.c.h.b16 %v220
        %v515 = vunpack.c.l.b16 %v221
        %v516 = vunpack.c.h.b16 %v221
        %v517 = vunpack.c.l.b16 %v222
        %v518 = vunpack.c.h.b16 %v222
        %v519 = vunpack.c.l.b16 %v223
        %v520 = vunpack.c.h.b16 %v223
        %v521 = vunpack.c.l.b16 %v224
        %v522 = vunpack.c.h.b16 %v224
        %v523 = vunpack.c.l.b16 %v225
        %v524 = vunpack.c.h.b16 %v225
        %v525 = vunpack.c.l.b16 %v226
        %v526 = vunpack.c.h.b16 %v226
        %v527 = vunpack.c.l.b16 %v227
        %v528 = vunpack.c.h.b16 %v227
        %v529 = vunpack.c.l.b16 %v228
        %v530 = vunpack.c.h.b16 %v228
        %v531 = vunpack.c.l.b16 %v229
        %v532 = vunpack.c.h.b16 %v229
        %v533 = vunpack.c.l.b16 %v230
        %v534 = vunpack.c.h.b16 %v230
        %v535 = vunpack.c.l.b16 %v231
        %v536 = vunpack.c.h.b16 %v231
        %v537 = vunpack.c.l.b16 %v232
        %v538 = vunpack.c.h.b16 %v232
        %v539 = vunpack.c.l.b16 %v233
        %v540 = vunpack.c.h.b16 %v233
        %v541 = vunpack.c.l.b16 %v234
        %v542 = vunpack.c.h.b16 %v234
        %v543 = vunpack.c.l.b16 %v235
        %v544 = vunpack.c.h.b16 %v235
        %v545 = vunpack.c.l.b16 %v236
        %v546 = vunpack.c.h.b16 %v236
        %v547 = vunpack.c.l.b16 %v237
        %v548 = vunpack.c.h.b16 %v237
        %v549 = vunpack.c.l.b16 %v238
        %v550 = vunpack.c.h.b16 %v238
        %v551 = vunpack.c.l.b16 %v239
        %v552 = vunpack.c.h.b16 %v239
        %v553 = vunpack.c.l.b16 %v240
        %v554 = vunpack.c.h.b16 %v240
        %v555 = vunpack.c.l.b16 %v241
        %v556 = vunpack.c.h.b16 %v241
        %v557 = vunpack.c.l.b16 %v242
        %v558 = vunpack.c.h.b16 %v242
        %v559 = vunpack.c.l.b16 %v243
        %v560 = vunpack.c.h.b16 %v243
        %v561 = vunpack.c.l.b16 %v244
        %v562 = vunpack.c.h.b16 %v244
        %v563 = vunpack.c.l.b16 %v245
        %v564 = vunpack.c.h.b16 %v245
        %v565 = vunpack.c.l.b16 %v246
        %v566 = vunpack.c.h.b16 %v246
        %v567 = vunpack.c.l.b16 %v247
        %v568 = vunpack.c.h.b16 %v247
        %v569 = vunpack.c.l.b16 %v248
        %v570 = vunpack.c.h.b16 %v248
        %v571 = vunpack.c.l.b16 %v249
        %v572 = vunpack.c.h.b16 %v249
        %v573 = vunpack.c.l.b16 %v250
        %v574 = vunpack.c.h.b16 %v250
        %v575 = vunpack.c.l.b16 %v251
        %v576 = vunpack.c.h.b16 %v251
        %v577 = vunpack.c.l.b16 %v252
        %v578 = vunpack.c.h.b16 %v252
        %v579 = vunpack.c.l.b16 %v253
        %v580 = vunpack.c.h.b16 %v253
        %v581 = vunpack.c.l.b16 %v254
        %v582 = vunpack.c.h.b16 %v254
        %v583 = vunpack.c.l.b16 %v255
        %v584 = vunpack.c.h.b16 %v255
        %v585 = vunpack.c.l.b16 %v256
        %v586 = vunpack.c.h.b16 %v256
        %v587 = vunpack.c.l.b16 %v257
        %v588 = vunpack.c.h.b16 %v257
        %v589 = vunpack.c.l.b16 %v258
        %v590 = vunpack.c.h.b16 %v258
        %v591 = vunpack.c.l.b16 %v259
        %v592 = vunpack.c.h.b16 %v259
        %v593 = vunpack.c.l.b16 %v260
        %v594 = vunpack.c.h.b16 %v260
        %v595 = vunpack.c.l.b16 %v261
        %v596 = vunpack.c.h.b16 %v261
        %v597 = vunpack.c.l.b16 %v262
        %v598 = vunpack.c.h.b16 %v262
        %v599 = vunpack.c.l.b16 %v263
        %v600 = vunpack.c.h.b16 %v263
        %v601 = vunpack.c.l.b16 %v264
        %v602 = vunpack.c.h.b16 %v264
        %v603 = vunpack.c.l.b16 %v265
        %v604 = vunpack.c.h.b16 %v265
        %v605 = vunpack.c.l.b16 %v266
        %v606 = vunpack.c.h.b16 %v266
        %v607 = vunpack.c.l.b16 %v267
        %v608 = vunpack.c.h.b16 %v267
        %v609 = vunpack.c.l.b16 %v268
        %v610 = vunpack.c.h.b16 %v268
        %v611 = vunpack.c.l.b16 %v269
        %v612 = vunpack.c.h.b16 %v269
        %v613 = vunpack.c.l.b16 %v270
        %v614 = vunpack.c.h.b16 %v270
        %v615 = vunpack.c.l.b16 %v271
        %v616 = vunpack.c.h.b16 %v271
        %v617 = vunpack.c.l.b16 %v272
        %v618 = vunpack.c.h.b16 %v272
        %v619 = vunpack.c.l.b16 %v273
        %v620 = vunpack.c.h.b16 %v273
        %v621 = vunpack.c.l.b16 %v274
        %v622 = vunpack.c.h.b16 %v274
        %v623 = vunpack.c.l.b16 %v275
        %v624 = vunpack.c.h.b16 %v275
        %v625 = vunpack.c.l.b16 %v276
        %v626 = vunpack.c.h.b16 %v276
        %v627 = vunpack.c.l.b16 %v277
        %v628 = vunpack.c.h.b16 %v277
        %v629 = vunpack.c.l.b16 %v278
        %v630 = vunpack.c.h.b16 %v278
        %v631 = vunpack.c.l.b16 %v279
        %v632 = vunpack.c.h.b16 %v279
        %v633 = vunpack.c.l.b16 %v280
        %v634 = vunpack.c.h.b16 %v280
        %v635 = vunpack.c.l.b16 %v281
        %v636 = vunpack.c.h.b16 %v281
        %v637 = vunpack.c.l.b16 %v282
        %v638 = vunpack.c.h.b16 %v282
        %v639 = vunpack.c.l.b16 %v283
        %v640 = vunpack.c.h.b16 %v283
        %v641 = vunpack.c.l.b16 %v284
        %v642 = vunpack.c.h.b16 %v284
        %v643 = vunpack.c.l.b16 %v285
        %v644 = vunpack.c.h.b16 %v285
        %v645 = vunpack.c.l.b16 %v286
        %v646 = vunpack.c.h.b16 %v286
        %v647 = vunpack.c.l.b16 %v287
        %v648 = vunpack.c.h.b16 %v287
        %v649 = vunpack.c.l.b16 %v288
        %v650 = vunpack.c.h.b16 %v288
        %v651 = vunpack.c.l.b16 %v289
        %v652 = vunpack.c.h.b16 %v289
        %v653 = vunpack.c.l.b16 %v290
        %v654 = vunpack.c.h.b16 %v290
        %v655 = vunpack.c.l.b16 %v291
        %v656 = vunpack.c.h.b16 %v291
        %v657 = vunpack.c.l.b16 %v292
        %v658 = vunpack.c.h.b16 %v292
        %v659 = vunpack.c.l.b16 %v293
        %v660 = vunpack.c.h.b16 %v293
        %v661 = vunpack.c.l.b16 %v294
        %v662 = vunpack.c.h.b16 %v294
        %v663 = vunpack.c.l.b16 %v295
        %v664 = vunpack.c.h.b16 %v295
        %v665 = vunpack.c.l.b16 %v296
        %v666 = vunpack.c.h.b16 %v296
        %v667 = vunpack.c.l.b16 %v297
        %v668 = vunpack.c.h.b16 %v297
        %v669 = vunpack.c.l.b16 %v298
        %v670 = vunpack.c.h.b16 %v298
        %v671 = vunpack.c.l.b16 %v299
        %v672 = vunpack.c.h.b16 %v299
        %v673 = vunpack.c.l.b16 %v300
        %v674 = vunpack.c.h.b16 %v300
        %v675 = vunpack.c.l.b16 %v301
        %v676 = vunpack.c.h.b16 %v301
        %v677 = vunpack.c.l.b16 %v302
        %v678 = vunpack.c.h.b16 %v302
        %v679 = vunpack.c.l.b16 %v303
        %v680 = vunpack.c.h.b16 %v303
        %v681 = vunpack.c.l.b16 %v304
        %v682 = vunpack.c.h.b16 %v304
        %v683 = vunpack.c.l.b16 %v305
        %v684 = vunpack.c.h.b16 %v305
        %v685 = vunpack.c.l.b16 %v306
        %v686 = vunpack.c.h.b16 %v306
        %v687 = vunpack.c.l.b16 %v307
        %v688 = vunpack.c.h.b16 %v307
        %v689 = vunpack.c.l.b16 %v308
        %v690 = vunpack.c.h.b16 %v308
        %v691 = vunpack.c.l.b16 %v309
        %v692 = vunpack.c.h.b16 %v309
        %v693 = vunpack.c.l.b16 %v310
        %v694 = vunpack.c.h.b16 %v310
        %v695 = vunpack.c.l.b16 %v311
        %v696 = vunpack.c.h.b16 %v311
        %v697 = vunpack.c.l.b16 %v312
        %v698 = vunpack.c.h.b16 %v312
        %v699 = vunpack.c.l.b16 %v313
        %v700 = vunpack.c.h.b16 %v313
        %v701 = vunpack.c.l.b16 %v314
        %v702 = vunpack.c.h.b16 %v314
        %v703 = vunpack.c.l.b16 %v315
        %v704 = vunpack.c.h.b16 %v315
        %v705 = vunpack.c.l.b16 %v316
        %v706 = vunpack.c.h.b16 %v316
        %v707 = vunpack.c.l.b16 %v317
        %v708 = vunpack.c.h.b16 %v317
        %v709 = vunpack.c.l.b16 %v318
        %v710 = vunpack.c.h.b16 %v318
        %v711 = vunpack.c.l.b16 %v319
        %v712 = vunpack.c.h.b16 %v319
        %v713 = vunpack.c.l.b16 %v320
        %v714 = vunpack.c.h.b16 %v320
        %v715 = vunpack.c.l.b16 %v321
        %v716 = vunpack.c.h.b16 %v321
        %v717 = vpack.c.b16 %v469, %v461
        %v718 = vpack.c.b16 %v470, %v462
        %v719 = vpack.c.b16 %v471, %v463
        %v720 = vpack.c.b16 %v472, %v464
        %v721 = vpack.c.b16 %v473, %v465
        %v722 = vpack.c.b16 %v474, %v466
        %v723 = vpack.c.b16 %v475, %v467
        %v724 = vpack.c.b16 %v476, %v468
        %v725 = vpack.c.b16 %v485, %v477
        %v726 = vpack.c.b16 %v486, %v478
        %v727 = vpack.c.b16 %v487, %v479
        %v728 = vpack.c.b16 %v488, %v480
        %v729 = vpack.c.b16 %v489, %v481
        %v730 = vpack.c.b16 %v490, %v482
        %v731 = vpack.c.b16 %v491, %v483
        %v732 = vpack.c.b16 %v492, %v484
        %v733 = vpack.c.b16 %v501, %v493
        %v734 = vpack.c.b16 %v502, %v494
        %v735 = vpack.c.b16 %v503, %v495
        %v736 = vpack.c.b16 %v504, %v496
        %v737 = vpack.c.b16 %v505, %v497
        %v738 = vpack.c.b16 %v506, %v498
        %v739 = vpack.c.b16 %v507, %v499
        %v740 = vpack.c.b16 %v508, %v500
        %v741 = vpack.c.b16 %v517, %v509
        %v742 = vpack.c.b16 %v518, %v510
        %v743 = vpack.c.b16 %v519, %v511
        %v744 = vpack.c.b16 %v520, %v512
        %v745 = vpack.c.b16 %v521, %v513
        %v746 = vpack.c.b16 %v522, %v514
        %v747 = vpack.c.b16 %v523, %v515
        %v748 = vpack.c.b16 %v524, %v516
        %v749 = vpack.c.b16 %v533, %v525
        %v750 = vpack.c.b16 %v534, %v526
        %v751 = vpack.c.b16 %v535, %v527
        %v752 = vpack.c.b16 %v536, %v528
        %v753 = vpack.c.b16 %v537, %v529
        %v754 = vpack.c.b16 %v538, %v530
        %v755 = vpack.c.b16 %v539, %v531
        %v756 = vpack.c.b16 %v540, %v532
        %v757 = vpack.c.b16 %v549, %v541
        %v758 = vpack.c.b16 %v550, %v542
        %v759 = vpack.c.b16 %v551, %v543
        %v760 = vpack.c.b16 %v552, %v544
        %v761 = vpack.c.b16 %v553, %v545
        %v762 = vpack.c.b16 %v554, %v546
        %v763 = vpack.c.b16 %v555, %v547
        %v764 = vpack.c.b16 %v556, %v548
        %v765 = vpack.c.b16 %v565, %v557
        %v766 = vpack.c.b16 %v566, %v558
        %v767 = vpack.c.b16 %v567, %v559
        %v768 = vpack.c.b16 %v568, %v560
        %v769 = vpack.c.b16 %v569, %v561
        %v770 = vpack.c.b16 %v570, %v562
        %v771 = vpack.c.b16 %v571, %v563
        %v772 = vpack.c.b16 %v572, %v564
        %v773 = vpack.c.b16 %v581, %v573
        %v774 = vpack.c.b16 %v582, %v574
        %v775 = vpack.c.b16 %v583, %v575
        %v776 = vpack.c.b16 %v584, %v576
        %v777 = vpack.c.b16 %v585, %v577
        %v778 = vpack.c.b16 %v586, %v578
        %v779 = vpack.c.b16 %v587, %v579
        %v780 = vpack.c.b16 %v588, %v580
        %v781 = vpack.c.b16 %v597, %v589
        %v782 = vpack.c.b16 %v598, %v590
        %v783 = vpack.c.b16 %v599, %v591
        %v784 = vpack.c.b16 %v600, %v592
        %v785 = vpack.c.b16 %v601, %v593
        %v786 = vpack.c.b16 %v602, %v594
        %v787 = vpack.c.b16 %v603, %v595
        %v788 = vpack.c.b16 %v604, %v596
        %v789 = vpack.c.b16 %v613, %v605
        %v790 = vpack.c.b16 %v614, %v606
        %v791 = vpack.c.b16 %v615, %v607
        %v792 = vpack.c.b16 %v616, %v608
        %v793 = vpack.c.b16 %v617, %v609
        %v794 = vpack.c.b16 %v618, %v610
        %v795 = vpack.c.b16 %v619, %v611
        %v796 = vpack.c.b16 %v620, %v612
        %v797 = vpack.c.b16 %v629, %v621
        %v798 = vpack.c.b16 %v630, %v622
        %v799 = vpack.c.b16 %v631, %v623
        %v800 = vpack.c.b16 %v632, %v624
        %v801 = vpack.c.b16 %v633, %v625
        %v802 = vpack.c.b16 %v634, %v626
        %v803 = vpack.c.b16 %v635, %v627
        %v804 = vpack.c.b16 %v636, %v628
        %v805 = vpack.c.b16 %v645, %v637
        %v806 = vpack.c.b16 %v646, %v638
        %v807 = vpack.c.b16 %v647, %v639
        %v808 = vpack.c.b16 %v648, %v640
        %v809 = vpack.c.b16 %v649, %v641
        %v810 = vpack.c.b16 %v650, %v642
        %v811 = vpack.c.b16 %v651, %v643
        %v812 = vpack.c.b16 %v652, %v644
        %v813 = vpack.c.b16 %v661, %v653
        %v814 = vpack.c.b16 %v662, %v654
        %v815 = vpack.c.b16 %v663, %v655
        %v816 = vpack.c.b16 %v664, %v656
        %v817 = vpack.c.b16 %v665, %v657
        %v818 = vpack.c.b16 %v666, %v658
        %v819 = vpack.c.b16 %v667, %v659
        %v820 = vpack.c.b16 %v668, %v660
        %v821 = vpack.c.b16 %v677, %v669
        %v822 = vpack.c.b16 %v678, %v670
        %v823 = vpack.c.b16 %v679, %v671
        %v824 = vpack.c.b16 %v680, %v672
        %v825 = vpack.c.b16 %v681, %v673
        %v826 = vpack.c.b16 %v682, %v674
        %v827 = vpack.c.b16 %v683, %v675
        %v828 = vpack.c.b16 %v684, %v676
        %v829 = vpack.c.b16 %v693, %v685
        %v830 = vpack.c.b16 %v694, %v686
        %v831 = vpack.c.b16 %v695, %v687
        %v832 = vpack.c.b16 %v696, %v688
        %v833 = vpack.c.b16 %v697, %v689
        %v834 = vpack.c.b16 %v698, %v690
        %v835 = vpack.c.b16 %v699, %v691
        %v836 = vpack.c.b16 %v700, %v692
        %v837 = vpack.c.b16 %v709, %v701
        %v838 = vpack.c.b16 %v710, %v702
        %v839 = vpack.c.b16 %v711, %v703
        %v840 = vpack.c.b16 %v712, %v704
        %v841 = vpack.c.b16 %v713, %v705
        %v842 = vpack.c.b16 %v714, %v706
        %v843 = vpack.c.b16 %v715, %v707
        %v844 = vpack.c.b16 %v716, %v708
        %973 = vmatprep.subr.bf16.mxu0 %v774
        %974 = vmatpush1.bf16.msra.mxu0 %v773
        %975 = vmatprep.subr.bf16.mxu0 %v766
        %976 = vmatpush1.bf16.msra.mxu0 %v765
        %977 = vmatprep.subr.bf16.mxu0 %v758
        %978 = vmatpush1.bf16.msra.mxu0 %v757
        %979 = vmatprep.subr.bf16.mxu0 %v750
        %980 = vmatpush1.bf16.msra.mxu0 %v749
        %981 = vmatprep.subr.bf16.mxu0 %v742
        %982 = vmatpush1.bf16.msra.mxu0 %v741
        %983 = vmatprep.subr.bf16.mxu0 %v734
        %984 = vmatpush1.bf16.msra.mxu0 %v733
        %985 = vmatprep.subr.bf16.mxu0 %v726
        %986 = vmatpush1.bf16.msra.mxu0 %v725
        %987 = vmatprep.subr.bf16.mxu0 %v718
        %988 = vmatpush1.bf16.msra.mxu0 %v717
        %989 = vmatprep.subr.bf16.mxu0 %v838
        %990 = vmatpush2.bf16.msra.mxu0 %v837
        %991 = vmatprep.subr.bf16.mxu0 %v830
        %992 = vmatpush2.bf16.msra.mxu0 %v829
        %993 = vmatprep.subr.bf16.mxu0 %v822
        %994 = vmatpush2.bf16.msra.mxu0 %v821
        %995 = vmatprep.subr.bf16.mxu0 %v814
        %996 = vmatpush2.bf16.msra.mxu0 %v813
        %997 = vmatprep.subr.bf16.mxu0 %v806
        %998 = vmatpush2.bf16.msra.mxu0 %v805
        %999 = vmatprep.subr.bf16.mxu0 %v798
        %1000 = vmatpush2.bf16.msra.mxu0 %v797
        %1001 = vmatprep.subr.bf16.mxu0 %v790
        %1002 = vmatpush2.bf16.msra.mxu0 %v789
        %1003 = vmatprep.subr.bf16.mxu0 %v782
        %1004 = vmatpush2.bf16.msra.mxu0 %v781
        %1005 = vmatprep.mubr.bf16.mxu0 %v330
        %1006 = vmatmul.mubr.bf16.gmra.mxu0 %v329
        %v1007 = vpop.f32.mrf.mxu0
        %v1008 = vadd.f32 0.0, %v1007
        %v1009 = vpop.f32.mrf.mxu0
        %v1010 = vadd.f32 0.0, %v1009
        %v1011 = vpop.f32.mrf.mxu0
        %v1012 = vpop.f32.mrf.mxu0
        %1013 = vdwg.mxu0
        %1014 = vmatprep.subr.bf16.mxu0 %v776
        %1015 = vmatpush1.bf16.msra.mxu0 %v775
        %1016 = vmatprep.subr.bf16.mxu0 %v768
        %1017 = vmatpush1.bf16.msra.mxu0 %v767
        %1018 = vmatprep.subr.bf16.mxu0 %v760
        %1019 = vmatpush1.bf16.msra.mxu0 %v759
        %1020 = vmatprep.subr.bf16.mxu0 %v752
        %1021 = vmatpush1.bf16.msra.mxu0 %v751
        %1022 = vmatprep.subr.bf16.mxu0 %v744
        %1023 = vmatpush1.bf16.msra.mxu0 %v743
        %1024 = vmatprep.subr.bf16.mxu0 %v736
        %1025 = vmatpush1.bf16.msra.mxu0 %v735
        %1026 = vmatprep.subr.bf16.mxu0 %v728
        %1027 = vmatpush1.bf16.msra.mxu0 %v727
        %1028 = vmatprep.subr.bf16.mxu0 %v720
        %1029 = vmatpush1.bf16.msra.mxu0 %v719
        %1030 = vmatprep.subr.bf16.mxu0 %v840
        %1031 = vmatpush2.bf16.msra.mxu0 %v839
        %1032 = vmatprep.subr.bf16.mxu0 %v832
        %1033 = vmatpush2.bf16.msra.mxu0 %v831
        %1034 = vmatprep.subr.bf16.mxu0 %v824
        %1035 = vmatpush2.bf16.msra.mxu0 %v823
        %1036 = vmatprep.subr.bf16.mxu0 %v816
        %1037 = vmatpush2.bf16.msra.mxu0 %v815
        %1038 = vmatprep.subr.bf16.mxu0 %v808
        %1039 = vmatpush2.bf16.msra.mxu0 %v807
        %1040 = vmatprep.subr.bf16.mxu0 %v800
        %1041 = vmatpush2.bf16.msra.mxu0 %v799
        %1042 = vmatprep.subr.bf16.mxu0 %v792
        %1043 = vmatpush2.bf16.msra.mxu0 %v791
        %1044 = vmatprep.subr.bf16.mxu0 %v784
        %1045 = vmatpush2.bf16.msra.mxu0 %v783
        %1046 = vmatprep.mubr.bf16.mxu0 %v330
        %1047 = vmatmul.mubr.bf16.gmra.mxu0 %v329
        %v1048 = vpop.f32.mrf.mxu0
        %v1049 = vadd.f32 0.0, %v1048
        %v1050 = vpop.f32.mrf.mxu0
        %v1051 = vadd.f32 0.0, %v1050
        %v1052 = vpop.f32.mrf.mxu0
        %v1053 = vpop.f32.mrf.mxu0
        %1054 = vdwg.mxu0
        %1055 = vmatprep.subr.bf16.mxu0 %v778
        %1056 = vmatpush1.bf16.msra.mxu0 %v777
        %1057 = vmatprep.subr.bf16.mxu0 %v770
        %1058 = vmatpush1.bf16.msra.mxu0 %v769
        %1059 = vmatprep.subr.bf16.mxu0 %v762
        %1060 = vmatpush1.bf16.msra.mxu0 %v761
        %1061 = vmatprep.subr.bf16.mxu0 %v754
        %1062 = vmatpush1.bf16.msra.mxu0 %v753
        %1063 = vmatprep.subr.bf16.mxu0 %v746
        %1064 = vmatpush1.bf16.msra.mxu0 %v745
        %1065 = vmatprep.subr.bf16.mxu0 %v738
        %1066 = vmatpush1.bf16.msra.mxu0 %v737
        %1067 = vmatprep.subr.bf16.mxu0 %v730
        %1068 = vmatpush1.bf16.msra.mxu0 %v729
        %1069 = vmatprep.subr.bf16.mxu0 %v722
        %1070 = vmatpush1.bf16.msra.mxu0 %v721
        %1071 = vmatprep.subr.bf16.mxu0 %v842
        %1072 = vmatpush2.bf16.msra.mxu0 %v841
        %1073 = vmatprep.subr.bf16.mxu0 %v834
        %1074 = vmatpush2.bf16.msra.mxu0 %v833
        %1075 = vmatprep.subr.bf16.mxu0 %v826
        %1076 = vmatpush2.bf16.msra.mxu0 %v825
        %1077 = vmatprep.subr.bf16.mxu0 %v818
        %1078 = vmatpush2.bf16.msra.mxu0 %v817
        %1079 = vmatprep.subr.bf16.mxu0 %v810
        %1080 = vmatpush2.bf16.msra.mxu0 %v809
        %1081 = vmatprep.subr.bf16.mxu0 %v802
        %1082 = vmatpush2.bf16.msra.mxu0 %v801
        %1083 = vmatprep.subr.bf16.mxu0 %v794
        %1084 = vmatpush2.bf16.msra.mxu0 %v793
        %1085 = vmatprep.subr.bf16.mxu0 %v786
        %1086 = vmatpush2.bf16.msra.mxu0 %v785
        %1087 = vmatprep.mubr.bf16.mxu0 %v330
        %1088 = vmatmul.mubr.bf16.gmra.mxu0 %v329
        %v1089 = vpop.f32.mrf.mxu0
        %v1090 = vadd.f32 0.0, %v1089
        %v1091 = vpop.f32.mrf.mxu0
        %v1092 = vadd.f32 0.0, %v1091
        %v1093 = vpop.f32.mrf.mxu0
        %v1094 = vpop.f32.mrf.mxu0
        %1095 = vdwg.mxu0
        %1096 = vmatprep.subr.bf16.mxu0 %v780
        %1097 = vmatpush1.bf16.msra.mxu0 %v779
        %1098 = vmatprep.subr.bf16.mxu0 %v772
        %1099 = vmatpush1.bf16.msra.mxu0 %v771
        %1100 = vmatprep.subr.bf16.mxu0 %v764
        %1101 = vmatpush1.bf16.msra.mxu0 %v763
        %1102 = vmatprep.subr.bf16.mxu0 %v756
        %1103 = vmatpush1.bf16.msra.mxu0 %v755
        %1104 = vmatprep.subr.bf16.mxu0 %v748
        %1105 = vmatpush1.bf16.msra.mxu0 %v747
        %1106 = vmatprep.subr.bf16.mxu0 %v740
        %1107 = vmatpush1.bf16.msra.mxu0 %v739
        %1108 = vmatprep.subr.bf16.mxu0 %v732
        %1109 = vmatpush1.bf16.msra.mxu0 %v731
        %1110 = vmatprep.subr.bf16.mxu0 %v724
        %1111 = vmatpush1.bf16.msra.mxu0 %v723
        %1112 = vmatprep.subr.bf16.mxu0 %v844
        %1113 = vmatpush2.bf16.msra.mxu0 %v843
        %1114 = vmatprep.subr.bf16.mxu0 %v836
        %1115 = vmatpush2.bf16.msra.mxu0 %v835
        %1116 = vmatprep.subr.bf16.mxu0 %v828
        %1117 = vmatpush2.bf16.msra.mxu0 %v827
        %1118 = vmatprep.subr.bf16.mxu0 %v820
        %1119 = vmatpush2.bf16.msra.mxu0 %v819
        %1120 = vmatprep.subr.bf16.mxu0 %v812
        %1121 = vmatpush2.bf16.msra.mxu0 %v811
        %1122 = vmatprep.subr.bf16.mxu0 %v804
        %1123 = vmatpush2.bf16.msra.mxu0 %v803
        %1124 = vmatprep.subr.bf16.mxu0 %v796
        %1125 = vmatpush2.bf16.msra.mxu0 %v795
        %1126 = vmatprep.subr.bf16.mxu0 %v788
        %1127 = vmatpush2.bf16.msra.mxu0 %v787
        %1128 = vmatprep.mubr.bf16.mxu0 %v330
        %1129 = vmatmul.mubr.bf16.gmra.mxu0 %v329
        %v1130 = vpop.f32.mrf.mxu0
        %v1131 = vadd.f32 0.0, %v1130
        %v1132 = vpop.f32.mrf.mxu0
        %v1133 = vadd.f32 0.0, %v1132
        %v1134 = vpop.f32.mrf.mxu0
        %v1135 = vpop.f32.mrf.mxu0
        %1136 = vdwg.mxu0
        %v1139 = vcombine.low %v1008, %v1010
        %1141 = vst [vmem:[%s192] sm:$0xff] %v1139
        %v1144 = vcombine.low %v1049, %v1051
        %s1146 = scalar_lea.vmem %s192, 8 [#allocation7]
        %1147 = vst [vmem:[%s1146] sm:$0xff] %v1144
        %v1150 = vcombine.low %v1090, %v1092
        %s1152 = scalar_lea.vmem %s192, 16 [#allocation7]
        %1153 = vst [vmem:[%s1152] sm:$0xff] %v1150
        %v1156 = vcombine.low %v1131, %v1133
        %s1158 = scalar_lea.vmem %s192, 24 [#allocation7]
        %1159 = vst [vmem:[%s1158] sm:$0xff] %v1156
        %s1160 = sand.u32 %s91, 1
        %s1161 = scalar_lea.sflag [#allocation4], %s1160
        %s1162 = sand.u32 %s91, 1
        %s1163 = smul.addr %s1162, 32
        %s1164 = scalar_lea.vmem [#allocation7], %s1163
        // Predicated region
        $region37: #{tpu_custom_call.1} parent=27 // pred_check
          %p1165 = pneg %p101
        $region38: #{tpu_custom_call.1} parent=27 // pred_check_branch
          %1167 = sbr.rel (%p1165) target = $region40
        $region39: #{tpu_custom_call.1} parent=27 // pred_region
          %s1169 = ssub.s32 512, 512
          %1170 = vsyncadd %s1161, %s1169
          %s1171 = smul.addr %s25, 2
          %s1172 = smul.addr %s24, 8
          %s1173 = sadd.s32 %s1171, %s1172
          %s1174 = smul.addr %s1173, 64
          %s1175 = scalar_lea.hbm %s2, %s1174
          %s1176 = sshll.u32 %s1164, 4
          %s1177 = int_to_ptr.vmem [resolvable:$true] %s1176
          %1182 = dma.vmem_to_hbm [thread:$0]  %s1177, 512, %s1175, %s1161, 128, 128, 8
        $region40: #{tpu_custom_call.1} parent=27 // pred_fallthru
          _
      $region28: #{tpu_custom_call.1} parent=5 // pred_fallthru
        _
      %p1183 = scmp.le.s32.totalorder 2, %s15
      // Predicated region
      $region41: #{tpu_custom_call.1} parent=5 // pred_check
        %p1184 = pneg %p1183
      $region42: #{tpu_custom_call.1} parent=5 // pred_check_branch
        %1186 = sbr.rel (%p1184) target = $region44
      $region43: #{tpu_custom_call.1} parent=5 // pred_region
        %s1187 = ssub.s32 %s15, 2
        // Predicated region
        $region45: #{tpu_custom_call.1} parent=43 // pred_check
          %p1188 = pneg %p107
        $region46: #{tpu_custom_call.1} parent=43 // pred_check_branch
          %1190 = sbr.rel (%p1188) target = $region48
        $region47: #{tpu_custom_call.1} parent=43 // pred_region
          %s1191 = sand.u32 %s92, 1
          %s1192 = scalar_lea.sflag [#allocation4], %s1191
          %s1193 = sand.u32 %s92, 1
          %s1194 = smul.addr %s1193, 32
          %s1195 = scalar_lea.vmem [#allocation7], %s1194
          %1196 = dma.done %s1192, 512
        $region48: #{tpu_custom_call.1} parent=43 // pred_fallthru
          _
      $region44: #{tpu_custom_call.1} parent=5 // pred_fallthru
        _
    $region6: #{tpu_custom_call.1} parent=1 // loop_footer
      %s19 = sadd.s32 1, %s15
    $region7: #{tpu_custom_call.1} parent=1 // loop_footer_branch
      %14 = sbr.rel target = $region3
    $region8: #{tpu_custom_call.1} parent=1 // loop_exit
      _
    %1197 = vsyncpa [#allocation3], 1
    %s1198 = scalar_lea.sflag [#allocation3], 1
    %1199 = vsyncpa %s1198, 1
    %1200 = vsyncpa [#allocation6], 1
    %1201 = vsyncpa [#allocation4], 1
    %s1202 = scalar_lea.sflag [#allocation4], 1
    %1203 = vsyncpa %s1202, 1

</llo_original>
